<compile_context>
chip_gen: v6e
topology: v6e:2x2x1
jax: 0.10.0
libtpu: 0.0.40
codegen_flags: <defaults>
</compile_context>

<pallas_src>
import functools
import math

import numpy as np
import jax
import jax.numpy as jnp
from jax.experimental import pallas as pl
from jax.experimental.pallas import tpu as pltpu


def _round_up(x, m):
    return ((x + m - 1) // m) * m


def _choose_tm(n_groups, lane_w, target_bytes):
    """Rows-per-block (multiple of 8): ~target_bytes output blocks, but keep
    >= 2 (preferably an even number of) grid steps so both v7x TensorCores
    get work, while blocks stay small enough for every generation's VMEM."""
    row_bytes = lane_w * 4
    ng8 = _round_up(max(n_groups, 1), 8)
    if ng8 <= 8:
        return 8
    tm = max(8, min(8192, (target_bytes // row_bytes) // 8 * 8))
    # At least two grid steps whenever there are >= 2 row-tiles of work.
    tm = min(tm, max(8, (ng8 // 2) // 8 * 8))
    grid = -(-ng8 // tm)
    if grid > 1 and grid % 2:
        # Prefer an even step count (v7x: 2 TensorCores on the parallel axis).
        tm_even = max(8, _round_up(-(-ng8 // (grid + 1)), 8))
        if -(-ng8 // tm_even) % 2 == 0:
            tm = tm_even
    return tm


def _sinusoidal_kernel(t_ref, invf_ref, sel_ref, out_ref, *, tm, dim, r,
                       t_resident, use_mxu):
    # t_ref:    (n_groups_pad, r) resident  OR  (tm, r) per-block tile
    # invf_ref: (1, r*dim)  interleaved inv_freq tiled r times (resident)
    # sel_ref:  (r, r*dim)  0/1 selection matrix (resident; unused if r == 1)
    # out_ref:  (tm, r*dim) lane-dense output block
    if t_resident:
        start = pl.multiple_of(pl.program_id(0) * tm, 8)
        t_blk = t_ref[pl.ds(start, tm), :]              # (tm, r)
    else:
        t_blk = t_ref[...]                              # (tm, r)

    if r == 1:
        t_rep = jnp.broadcast_to(t_blk, (tm, dim))
    elif use_mxu:
        # Lane expansion on the otherwise-idle MXU.  sel has exactly one 1.0
        # per column, so the contraction reproduces t exactly at HIGHEST
        # precision (f32 split terms each multiply by 1.0, accumulate in f32).
        t_rep = jnp.dot(t_blk, sel_ref[...],
                        precision=jax.lax.Precision.HIGHEST,
                        preferred_element_type=jnp.float32)
    else:
        # VPU/XLU fallback expansion (hides under the store DMA on v5e/v6e).
        t_rep = jnp.concatenate(
            [jnp.broadcast_to(t_blk[:, j:j + 1], (tm, dim)) for j in range(r)],
            axis=1)                                     # (tm, r*dim)

    # inv_freq multiply stays on the VPU -> bit-exact f32 parity with torch.
    out_ref[...] = (t_rep * invf_ref[...]).astype(out_ref.dtype)


def sinusoidal_embeddings(t, dim, theta=10000.0, out_dtype=jnp.float32,
                          t_resident_max_bytes=4 << 20,
                          target_block_bytes=4 << 20,
                          small_fallback_bytes=256 << 10):
    """Pallas TPU implementation of SinusoidalEmbeddings.forward.

    Pass out_dtype=jnp.bfloat16 for the fast path (halves HBM store bytes)
    if the downstream rotary consumer accepts bf16; f32 (default) matches the
    torch reference exactly.
    """
    assert dim % 2 == 0 and dim > 0
    orig_shape = t.shape
    n = int(np.prod(orig_shape)) if orig_shape else 1

    inv_freq = 1.0 / (theta ** (jnp.arange(0, dim, 2, dtype=jnp.float32) / dim))

    if n == 0:                                          # zero-sized input guard
        return jnp.zeros((*orig_shape, dim), out_dtype)

    # Tiny tables: pallas_call launch + pipeline setup dominates -> plain XLA.
    if n * dim * jnp.dtype(out_dtype).itemsize <= small_fallback_bytes:
        freqs = t[..., None].astype(jnp.float32) * inv_freq[None, :]
        return jnp.repeat(freqs, 2, axis=-1).astype(out_dtype)

    inv_half = jnp.repeat(inv_freq, 2)                  # (dim,) [f0,f0,f1,f1,...]

    # Fold rows into lanes so output blocks are a multiple of 128 lanes wide.
    r = 128 // math.gcd(dim, 128)
    lane_w = r * dim
    invf_tiled = jnp.tile(inv_half, r)[None, :]         # (1, r*dim)

    # 0/1 selection matrix: column j*dim + k picks folded column j of t.
    sel_np = np.zeros((r, lane_w), np.float32)
    for j in range(r):
        sel_np[j, j * dim:(j + 1) * dim] = 1.0
    sel = jnp.asarray(sel_np)

    n_groups = -(-n // r)
    tm = _choose_tm(n_groups, lane_w, target_block_bytes)
    n_groups_pad = _round_up(n_groups, tm)
    n_pad = n_groups_pad * r

    t_flat = jnp.reshape(t, (-1,)).astype(jnp.float32)
    if n_pad != n:
        t_flat = jnp.pad(t_flat, (0, n_pad - n))
    t_fold = jnp.reshape(t_flat, (n_groups_pad, r))

    # Resident t (single DMA, sliced in-kernel) for all realistic N; the
    # narrow per-step t DMA is only a fallback for enormous inputs.
    t_resident = (n_groups_pad * r * 4) <= t_resident_max_bytes
    if t_resident:
        t_spec = pl.BlockSpec((n_groups_pad, r), lambda i: (0, 0))
    else:
        t_spec = pl.BlockSpec((tm, r), lambda i: (i, 0))

    def run(use_mxu):
        kernel = functools.partial(_sinusoidal_kernel, tm=tm, dim=dim, r=r,
                                   t_resident=t_resident, use_mxu=use_mxu)
        return pl.pallas_call(
            kernel,
            out_shape=jax.ShapeDtypeStruct((n_groups_pad, lane_w), out_dtype),
            grid=(n_groups_pad // tm,),
            in_specs=[
                t_spec,                                        # t (resident or tiled)
                pl.BlockSpec((1, lane_w), lambda i: (0, 0)),   # inv_freq (resident)
                pl.BlockSpec((r, lane_w), lambda i: (0, 0)),   # sel      (resident)
            ],
            out_specs=pl.BlockSpec((tm, lane_w), lambda i: (i, 0)),
            compiler_params=pltpu.CompilerParams(
                dimension_semantics=("parallel",),
                vmem_limit_bytes=32 * 1024 * 1024),
        )(t_fold, invf_tiled, sel)

    if r == 1:
        out = run(use_mxu=False)                 # pure broadcast; no MXU needed
    else:
        try:
            out = run(use_mxu=True)
        except Exception:
            # If HIGHEST-precision MXU contraction is unavailable in this
            # jax/Mosaic build, fall back to the exact VPU/XLU expansion.
            out = run(use_mxu=False)

    out = jnp.reshape(out, (n_pad, dim))[:n]
    return jnp.reshape(out, (*orig_shape, dim))


def _reference(t, dim, theta=10000.0):
    inv_freq = 1.0 / (theta ** (jnp.arange(0, dim, 2, dtype=jnp.float32) / dim))
    freqs = t[..., None].astype(jnp.float32) * inv_freq[None, :]
    return jnp.repeat(freqs, 2, axis=-1)


if __name__ == "__main__":
    key = jax.random.PRNGKey(0)

    # 1) Module's typical tiny call -> jnp fast path (launch overhead dominates).
    B, S, DIM = 2, 8, 32
    t = jax.random.uniform(key, (B, S), jnp.float32) * 100.0
    out = jax.block_until_ready(sinusoidal_embeddings(t, DIM))
    assert out.shape == (B, S, DIM), out.shape
    np.testing.assert_allclose(np.asarray(out), np.asarray(_reference(t, DIM)),
                               rtol=1e-6, atol=1e-6)

    # 2) Same tiny shape forced through the Pallas kernel (MXU fold, r = 4).
    out_p = jax.block_until_ready(
        sinusoidal_embeddings(t, DIM, small_fallback_bytes=0))
    np.testing.assert_allclose(np.asarray(out_p), np.asarray(_reference(t, DIM)),
                               rtol=1e-6, atol=1e-6)

    # 3) Medium shape: natural Pallas path, 2 even "parallel" grid steps, r = 2.
    t2 = jax.random.uniform(jax.random.PRNGKey(1), (4, 512), jnp.float32) * 50.0
    out2 = jax.block_until_ready(sinusoidal_embeddings(t2, 64))
    np.testing.assert_allclose(np.asarray(out2), np.asarray(_reference(t2, 64)),
                               rtol=1e-6, atol=1e-6)

    # 4) dim a multiple of 128 -> r = 1 broadcast path.
    t4 = jax.random.uniform(jax.random.PRNGKey(3), (2, 64), jnp.float32) * 10.0
    out4 = jax.block_until_ready(
        sinusoidal_embeddings(t4, 128, small_fallback_bytes=0))
    np.testing.assert_allclose(np.asarray(out4), np.asarray(_reference(t4, 128)),
                               rtol=1e-6, atol=1e-6)

    # 5) Per-step tiled-t fallback (forced with a zero residency budget).
    t3 = jax.random.uniform(jax.random.PRNGKey(2), (2, 64), jnp.float32) * 10.0
    out3 = jax.block_until_ready(
        sinusoidal_embeddings(t3, 32, t_resident_max_bytes=0,
                              small_fallback_bytes=0))
    np.testing.assert_allclose(np.asarray(out3), np.asarray(_reference(t3, 32)),
                               rtol=1e-6, atol=1e-6)

    print("KERNEL_OK")
</pallas_src>

<mosaic_0001>
module attributes {stable_mosaic.version = 11 : i64} {
  func.func @_sinusoidal_kernel(%arg0: i32, %arg1: memref<8x4xf32, #tpu.memory_space<vmem>>, %arg2: memref<1x128xf32, #tpu.memory_space<vmem>>, %arg3: memref<4x128xf32, #tpu.memory_space<vmem>>, %arg4: memref<8x128xf32, #tpu.memory_space<vmem>>) attributes {dimension_semantics = [#tpu.dimension_semantics<parallel>], iteration_bounds = array<i64: 1>, scalar_prefetch = 0 : i64, scratch_operands = 0 : i64, tpu.core_type = #tpu.core_type<tc>, window_params = [{pipeline_mode = #tpu.pipeline_mode<synchronous>, transform_indices = @transform_0, window_bounds = array<i64: 8, 4>}, {pipeline_mode = #tpu.pipeline_mode<synchronous>, transform_indices = @transform_1, window_bounds = array<i64: 1, 128>}, {pipeline_mode = #tpu.pipeline_mode<synchronous>, transform_indices = @transform_2, window_bounds = array<i64: 4, 128>}, {transform_indices = @transform_3, window_bounds = array<i64: 8, 128>}]} {
    %c8_i32 = arith.constant 8 : i32
    %0 = arith.muli %arg0, %c8_i32 : i32
    %1 = tpu.assume_multiple %0, 8 : i32
    %2 = arith.index_cast %1 : i32 to index
    %c0 = arith.constant 0 : index
    %3 = vector.load %arg1[%2, %c0] : memref<8x4xf32, #tpu.memory_space<vmem>>, vector<8x4xf32>
    %c0_0 = arith.constant 0 : index
    %c0_1 = arith.constant 0 : index
    %4 = vector.load %arg3[%c0_0, %c0_1] : memref<4x128xf32, #tpu.memory_space<vmem>>, vector<4x128xf32>
    %cst = arith.constant dense<0.000000e+00> : vector<8x128xf32>
    %5 = tpu.matmul %3, %4, %cst {dimension_numbers = #tpu.dot_dimension_numbers<[1], [0], [0], [1], [0, 0, 1, 1], [], []>, precision = #tpu.contract_precision<fp32>} : vector<8x4xf32>, vector<4x128xf32>, vector<8x128xf32> -> vector<8x128xf32>
    %c0_2 = arith.constant 0 : index
    %c0_3 = arith.constant 0 : index
    %6 = vector.load %arg2[%c0_2, %c0_3] : memref<1x128xf32, #tpu.memory_space<vmem>>, vector<1x128xf32>
    %7 = vector.broadcast %6 : vector<1x128xf32> to vector<8x128xf32>
    %8 = arith.mulf %5, %7 : vector<8x128xf32>
    %c0_4 = arith.constant 0 : index
    %c0_5 = arith.constant 0 : index
    %9 = vector.load %arg4[%c0_4, %c0_5] : memref<8x128xf32, #tpu.memory_space<vmem>>, vector<8x128xf32>
    tpu.vector_store %arg4[%c0_4, %c0_5], %8 {strides = array<i32>} : memref<8x128xf32, #tpu.memory_space<vmem>>, vector<8x128xf32>,
    return
  }
  func.func @transform_0(%arg0: i32) -> (i32, i32) {
    %c0_i32 = arith.constant 0 : i32
    %c0_i32_0 = arith.constant 0 : i32
    %c0_i32_1 = arith.constant 0 : i32
    return %c0_i32, %c0_i32_0 : i32, i32
  }
  func.func @transform_1(%arg0: i32) -> (i32, i32) {
    %c0_i32 = arith.constant 0 : i32
    %c0_i32_0 = arith.constant 0 : i32
    %c0_i32_1 = arith.constant 0 : i32
    return %c0_i32, %c0_i32_0 : i32, i32
  }
  func.func @transform_2(%arg0: i32) -> (i32, i32) {
    %c0_i32 = arith.constant 0 : i32
    %c0_i32_0 = arith.constant 0 : i32
    %c0_i32_1 = arith.constant 0 : i32
    return %c0_i32, %c0_i32_0 : i32, i32
  }
  func.func @transform_3(%arg0: i32) -> (i32, i32) {
    %c0_i32 = arith.constant 0 : i32
    %c0_i32_0 = arith.constant 0 : i32
    return %arg0, %c0_i32 : i32, i32
  }
}

module attributes {stable_mosaic.version = 11 : i64} {
  func.func @_sinusoidal_kernel(%arg0: i32, %arg1: memref<8x4xf32, #tpu.memory_space<vmem>>, %arg2: memref<1x128xf32, #tpu.memory_space<vmem>>, %arg3: memref<4x128xf32, #tpu.memory_space<vmem>>, %arg4: memref<8x128xf32, #tpu.memory_space<vmem>>) attributes {dimension_semantics = [#tpu.dimension_semantics<parallel>], iteration_bounds = array<i64: 1>, scalar_prefetch = 0 : i64, scratch_operands = 0 : i64, tpu.core_type = #tpu.core_type<tc>, window_params = [{pipeline_mode = #tpu.pipeline_mode<synchronous>, transform_indices = @transform_0, window_bounds = array<i64: 8, 4>}, {pipeline_mode = #tpu.pipeline_mode<synchronous>, transform_indices = @transform_1, window_bounds = array<i64: 1, 128>}, {pipeline_mode = #tpu.pipeline_mode<synchronous>, transform_indices = @transform_2, window_bounds = array<i64: 4, 128>}, {transform_indices = @transform_3, window_bounds = array<i64: 8, 128>}]} {
    %c8_i32 = arith.constant 8 : i32
    %0 = arith.muli %arg0, %c8_i32 : i32
    %1 = tpu.assume_multiple %0, 8 : i32
    %2 = arith.index_cast %1 : i32 to index
    %c0 = arith.constant 0 : index
    %3 = vector.load %arg1[%2, %c0] : memref<8x4xf32, #tpu.memory_space<vmem>>, vector<8x4xf32>
    %4 = vector.extract_strided_slice %3 {offsets = [0, 0], sizes = [8, 1], strides = [1, 1]} : vector<8x4xf32> to vector<8x1xf32>
    %5 = vector.shape_cast %4 : vector<8x1xf32> to vector<8x1xf32>
    %6 = vector.broadcast %5 : vector<8x1xf32> to vector<8x32xf32>
    %7 = vector.extract_strided_slice %3 {offsets = [0, 1], sizes = [8, 1], strides = [1, 1]} : vector<8x4xf32> to vector<8x1xf32>
    %8 = vector.shape_cast %7 : vector<8x1xf32> to vector<8x1xf32>
    %9 = vector.broadcast %8 : vector<8x1xf32> to vector<8x32xf32>
    %10 = vector.extract_strided_slice %3 {offsets = [0, 2], sizes = [8, 1], strides = [1, 1]} : vector<8x4xf32> to vector<8x1xf32>
    %11 = vector.shape_cast %10 : vector<8x1xf32> to vector<8x1xf32>
    %12 = vector.broadcast %11 : vector<8x1xf32> to vector<8x32xf32>
    %13 = vector.extract_strided_slice %3 {offsets = [0, 3], sizes = [8, 1], strides = [1, 1]} : vector<8x4xf32> to vector<8x1xf32>
    %14 = vector.shape_cast %13 : vector<8x1xf32> to vector<8x1xf32>
    %15 = vector.broadcast %14 : vector<8x1xf32> to vector<8x32xf32>
    %16 = tpu.concatenate %6, %9, %12, %15 in 1 : vector<8x32xf32>, vector<8x32xf32>, vector<8x32xf32>, vector<8x32xf32> -> vector<8x128xf32>
    %c0_0 = arith.constant 0 : index
    %c0_1 = arith.constant 0 : index
    %17 = vector.load %arg2[%c0_0, %c0_1] : memref<1x128xf32, #tpu.memory_space<vmem>>, vector<1x128xf32>
    %18 = vector.broadcast %17 : vector<1x128xf32> to vector<8x128xf32>
    %19 = arith.mulf %16, %18 : vector<8x128xf32>
    %c0_2 = arith.constant 0 : index
    %c0_3 = arith.constant 0 : index
    %20 = vector.load %arg4[%c0_2, %c0_3] : memref<8x128xf32, #tpu.memory_space<vmem>>, vector<8x128xf32>
    tpu.vector_store %arg4[%c0_2, %c0_3], %19 {strides = array<i32>} : memref<8x128xf32, #tpu.memory_space<vmem>>, vector<8x128xf32>,
    return
  }
  func.func @transform_0(%arg0: i32) -> (i32, i32) {
    %c0_i32 = arith.constant 0 : i32
    %c0_i32_0 = arith.constant 0 : i32
    %c0_i32_1 = arith.constant 0 : i32
    return %c0_i32, %c0_i32_0 : i32, i32
  }
  func.func @transform_1(%arg0: i32) -> (i32, i32) {
    %c0_i32 = arith.constant 0 : i32
    %c0_i32_0 = arith.constant 0 : i32
    %c0_i32_1 = arith.constant 0 : i32
    return %c0_i32, %c0_i32_0 : i32, i32
  }
  func.func @transform_2(%arg0: i32) -> (i32, i32) {
    %c0_i32 = arith.constant 0 : i32
    %c0_i32_0 = arith.constant 0 : i32
    %c0_i32_1 = arith.constant 0 : i32
    return %c0_i32, %c0_i32_0 : i32, i32
  }
  func.func @transform_3(%arg0: i32) -> (i32, i32) {
    %c0_i32 = arith.constant 0 : i32
    %c0_i32_0 = arith.constant 0 : i32
    return %arg0, %c0_i32 : i32, i32
  }
}

</mosaic_0001>

<llo_original>
// kernel: tpu_custom_call.1
$region0: #{tpu_custom_call.1}
  #allocation0 [shape = 'u32[]', space=smem, size = 0x4, offset = 0x4, fixed_abs, tag = 'smem constant byte address 0x4 - core index']
  #allocation1 [shape = 'u32[144,128]{1,0:T(1,128)}', space=vmem, size = 0x12000, scoped, tag = 'internal scratch']
  %s0 = inlined_call_operand.vmem [shape: f32[8,4], index: 0, kind: input, shape index: {}]
  %s1 = inlined_call_operand.vmem [shape: f32[1,128], index: 1, kind: input, shape index: {}]
  %s2 = inlined_call_operand.vmem [shape: f32[4,128], index: 2, kind: input, shape index: {}]
  %s3 = inlined_call_operand.hbm [shape: f32[8,128], index: 3, kind: output, shape index: {}]
  %s4 = sld [smem:[#allocation0]]
  $region22: #{tpu_custom_call.1} parent=0
    _
  %s6 = ssub.s32 1, %s4
  %s7 = scalar_select 0, %s6, %s4
  $region1: #{tpu_custom_call.1} parent=0
    #allocation2 [shape = 'u8[4096]{0}', space=vmem, size = 0x1000, scoped, tag = 'output window, operand 0, single buffered']
    #allocation3 [shape = 's32[1]{0}', space=sflag, size = 0x4, scoped, tag = 'scoped memory for tpu_custom_call.1']
    %8 = vsyncpa [#allocation3], 0
    // Predicated region
    $region2: #{tpu_custom_call.1} parent=1 // pred_check
      _
    $region3: #{tpu_custom_call.1} parent=1 // pred_check_branch
      %10 = sbr.rel (0) target = $region5
    $region4: #{tpu_custom_call.1} parent=1 // pred_region
      _
    $region5: #{tpu_custom_call.1} parent=1 // pred_fallthru
      _
    // Predicated region
    $region6: #{tpu_custom_call.1} parent=1 // pred_check
      _
    $region7: #{tpu_custom_call.1} parent=1 // pred_check_branch
      %12 = sbr.rel (0) target = $region9
    $region8: #{tpu_custom_call.1} parent=1 // pred_region
      _
    $region9: #{tpu_custom_call.1} parent=1 // pred_fallthru
      _
    // Predicated region
    $region10: #{tpu_custom_call.1} parent=1 // pred_check
      _
    $region11: #{tpu_custom_call.1} parent=1 // pred_check_branch
      %14 = sbr.rel (0) target = $region13
    $region12: #{tpu_custom_call.1} parent=1 // pred_region
      _
    $region13: #{tpu_custom_call.1} parent=1 // pred_fallthru
      _
    %s15 = smul.u32 0, 8
    %s16 = scalar_lea.vmem %s0, %s15
    %v17 = vld [vmem:[%s16] sm:$0xff]
    %v18 = vld [vmem:[%s2] sm:$0xf]
    %vm19 = vcmask 31744
    %v21 = vsel %vm19, %v17, 0
    %vm23 = vcmask 1043456
    %v25 = vsel %vm23, %v18, 0
    %27 = vmatprep.subr.mxu0 0.0
    %28 = vmatpush1.msra.mxu0 0.0
    %29 = vmatprep.subr.mxu0 0.0
    %30 = vmatpush1.msra.mxu0 0.0
    %31 = vmatprep.subr.mxu0 0.0
    %32 = vmatpush1.msra.mxu0 0.0
    %33 = vmatprep.subr.mxu0 0.0
    %34 = vmatpush1.msra.mxu0 0.0
    %35 = vmatprep.subr.mxu0 0.0
    %36 = vmatpush1.msra.mxu0 0.0
    %37 = vmatprep.subr.mxu0 0.0
    %38 = vmatpush1.msra.mxu0 0.0
    %39 = vmatprep.subr.mxu0 0.0
    %40 = vmatpush1.msra.mxu0 0.0
    %41 = vmatprep.subr.mxu0 0.0
    %42 = vmatpush1.msra.mxu0 0.0
    %43 = vmatprep.subr.mxu0 0.0
    %44 = vmatpush1.msra.mxu0 0.0
    %45 = vmatprep.subr.mxu0 0.0
    %46 = vmatpush1.msra.mxu0 0.0
    %47 = vmatprep.subr.mxu0 0.0
    %48 = vmatpush1.msra.mxu0 0.0
    %49 = vmatprep.subr.mxu0 0.0
    %50 = vmatpush1.msra.mxu0 0.0
    %51 = vmatprep.subr.mxu0 0.0
    %52 = vmatpush1.msra.mxu0 0.0
    %53 = vmatprep.subr.mxu0 0.0
    %54 = vmatpush1.msra.mxu0 0.0
    %55 = vmatprep.subr.mxu0 0.0
    %56 = vmatpush1.msra.mxu0 0.0
    %57 = vmatprep.subr.mxu0 0.0
    %v58 = vand.u32 %v25, 4294901760
    %59 = vmatpush1.msra.mxu0 %v58
    %60 = vmatprep.subr.mxu0 0.0
    %61 = vmatpush2.msra.mxu0 0.0
    %62 = vmatprep.subr.mxu0 0.0
    %63 = vmatpush2.msra.mxu0 0.0
    %64 = vmatprep.subr.mxu0 0.0
    %65 = vmatpush2.msra.mxu0 0.0
    %66 = vmatprep.subr.mxu0 0.0
    %67 = vmatpush2.msra.mxu0 0.0
    %68 = vmatprep.subr.mxu0 0.0
    %69 = vmatpush2.msra.mxu0 0.0
    %70 = vmatprep.subr.mxu0 0.0
    %71 = vmatpush2.msra.mxu0 0.0
    %72 = vmatprep.subr.mxu0 0.0
    %73 = vmatpush2.msra.mxu0 0.0
    %74 = vmatprep.subr.mxu0 0.0
    %75 = vmatpush2.msra.mxu0 0.0
    %76 = vmatprep.subr.mxu0 0.0
    %77 = vmatpush2.msra.mxu0 0.0
    %78 = vmatprep.subr.mxu0 0.0
    %79 = vmatpush2.msra.mxu0 0.0
    %80 = vmatprep.subr.mxu0 0.0
    %81 = vmatpush2.msra.mxu0 0.0
    %82 = vmatprep.subr.mxu0 0.0
    %83 = vmatpush2.msra.mxu0 0.0
    %84 = vmatprep.subr.mxu0 0.0
    %85 = vmatpush2.msra.mxu0 0.0
    %86 = vmatprep.subr.mxu0 0.0
    %87 = vmatpush2.msra.mxu0 0.0
    %88 = vmatprep.subr.mxu0 0.0
    %89 = vmatpush2.msra.mxu0 0.0
    %90 = vmatprep.subr.mxu0 0.0
    %91 = vmatpush2.msra.mxu0 0.0
    %92 = vmatprep.mubr.f32.mxu0 0.0
    %v93 = vand.u32 %v21, 4294901760
    %v94 = vsub.f32 %v21, %v93
    %v95 = vand.u32 %v94, 4294901760
    %v96 = vsub.f32 %v94, %v95
    %v97 = vand.u32 %v96, 4294901760
    %98 = vmatmul.mubr.f32.gmra.mxu0 %v97
    %v99 = vpop.f32.mrf.mxu0
    %v100 = vadd.f32 0.0, %v99
    %v101 = vpop.f32.mrf.mxu0
    %102 = vdwg.mxu0
    %103 = vmatprep.subr.mxu0 0.0
    %104 = vmatpush1.msra.mxu0 0.0
    %105 = vmatprep.subr.mxu0 0.0
    %106 = vmatpush1.msra.mxu0 0.0
    %107 = vmatprep.subr.mxu0 0.0
    %108 = vmatpush1.msra.mxu0 0.0
    %109 = vmatprep.subr.mxu0 0.0
    %110 = vmatpush1.msra.mxu0 0.0
    %111 = vmatprep.subr.mxu0 0.0
    %112 = vmatpush1.msra.mxu0 0.0
    %113 = vmatprep.subr.mxu0 0.0
    %114 = vmatpush1.msra.mxu0 0.0
    %115 = vmatprep.subr.mxu0 0.0
    %116 = vmatpush1.msra.mxu0 0.0
    %117 = vmatprep.subr.mxu0 0.0
    %118 = vmatpush1.msra.mxu0 0.0
    %119 = vmatprep.subr.mxu0 0.0
    %120 = vmatpush1.msra.mxu0 0.0
    %121 = vmatprep.subr.mxu0 0.0
    %122 = vmatpush1.msra.mxu0 0.0
    %123 = vmatprep.subr.mxu0 0.0
    %124 = vmatpush1.msra.mxu0 0.0
    %125 = vmatprep.subr.mxu0 0.0
    %126 = vmatpush1.msra.mxu0 0.0
    %127 = vmatprep.subr.mxu0 0.0
    %128 = vmatpush1.msra.mxu0 0.0
    %129 = vmatprep.subr.mxu0 0.0
    %130 = vmatpush1.msra.mxu0 0.0
    %131 = vmatprep.subr.mxu0 0.0
    %132 = vmatpush1.msra.mxu0 0.0
    %133 = vmatprep.subr.mxu0 0.0
    %v134 = vand.u32 %v25, 4294901760
    %v135 = vsub.f32 %v25, %v134
    %v136 = vand.u32 %v135, 4294901760
    %v137 = vsub.f32 %v135, %v136
    %v138 = vand.u32 %v137, 4294901760
    %139 = vmatpush1.msra.mxu0 %v138
    %140 = vmatprep.subr.mxu0 0.0
    %141 = vmatpush2.msra.mxu0 0.0
    %142 = vmatprep.subr.mxu0 0.0
    %143 = vmatpush2.msra.mxu0 0.0
    %144 = vmatprep.subr.mxu0 0.0
    %145 = vmatpush2.msra.mxu0 0.0
    %146 = vmatprep.subr.mxu0 0.0
    %147 = vmatpush2.msra.mxu0 0.0
    %148 = vmatprep.subr.mxu0 0.0
    %149 = vmatpush2.msra.mxu0 0.0
    %150 = vmatprep.subr.mxu0 0.0
    %151 = vmatpush2.msra.mxu0 0.0
    %152 = vmatprep.subr.mxu0 0.0
    %153 = vmatpush2.msra.mxu0 0.0
    %154 = vmatprep.subr.mxu0 0.0
    %155 = vmatpush2.msra.mxu0 0.0
    %156 = vmatprep.subr.mxu0 0.0
    %157 = vmatpush2.msra.mxu0 0.0
    %158 = vmatprep.subr.mxu0 0.0
    %159 = vmatpush2.msra.mxu0 0.0
    %160 = vmatprep.subr.mxu0 0.0
    %161 = vmatpush2.msra.mxu0 0.0
    %162 = vmatprep.subr.mxu0 0.0
    %163 = vmatpush2.msra.mxu0 0.0
    %164 = vmatprep.subr.mxu0 0.0
    %165 = vmatpush2.msra.mxu0 0.0
    %166 = vmatprep.subr.mxu0 0.0
    %167 = vmatpush2.msra.mxu0 0.0
    %168 = vmatprep.subr.mxu0 0.0
    %169 = vmatpush2.msra.mxu0 0.0
    %170 = vmatprep.subr.mxu0 0.0
    %171 = vmatpush2.msra.mxu0 0.0
    %172 = vmatprep.mubr.f32.mxu0 0.0
    %v173 = vand.u32 %v21, 4294901760
    %174 = vmatmul.mubr.f32.gmra.mxu0 %v173
    %v175 = vpop.f32.mrf.mxu0
    %v176 = vadd.f32 %v100, %v175
    %v177 = vpop.f32.mrf.mxu0
    %178 = vdwg.mxu0
    %179 = vmatprep.subr.mxu0 0.0
    %180 = vmatpush1.msra.mxu0 0.0
    %181 = vmatprep.subr.mxu0 0.0
    %182 = vmatpush1.msra.mxu0 0.0
    %183 = vmatprep.subr.mxu0 0.0
    %184 = vmatpush1.msra.mxu0 0.0
    %185 = vmatprep.subr.mxu0 0.0
    %186 = vmatpush1.msra.mxu0 0.0
    %187 = vmatprep.subr.mxu0 0.0
    %188 = vmatpush1.msra.mxu0 0.0
    %189 = vmatprep.subr.mxu0 0.0
    %190 = vmatpush1.msra.mxu0 0.0
    %191 = vmatprep.subr.mxu0 0.0
    %192 = vmatpush1.msra.mxu0 0.0
    %193 = vmatprep.subr.mxu0 0.0
    %194 = vmatpush1.msra.mxu0 0.0
    %195 = vmatprep.subr.mxu0 0.0
    %196 = vmatpush1.msra.mxu0 0.0
    %197 = vmatprep.subr.mxu0 0.0
    %198 = vmatpush1.msra.mxu0 0.0
    %199 = vmatprep.subr.mxu0 0.0
    %200 = vmatpush1.msra.mxu0 0.0
    %201 = vmatprep.subr.mxu0 0.0
    %202 = vmatpush1.msra.mxu0 0.0
    %203 = vmatprep.subr.mxu0 0.0
    %204 = vmatpush1.msra.mxu0 0.0
    %205 = vmatprep.subr.mxu0 0.0
    %206 = vmatpush1.msra.mxu0 0.0
    %207 = vmatprep.subr.mxu0 0.0
    %208 = vmatpush1.msra.mxu0 0.0
    %209 = vmatprep.subr.mxu0 0.0
    %v210 = vand.u32 %v25, 4294901760
    %v211 = vsub.f32 %v25, %v210
    %212 = vmatpush1.msra.mxu0 %v211
    %213 = vmatprep.subr.mxu0 0.0
    %214 = vmatpush2.msra.mxu0 0.0
    %215 = vmatprep.subr.mxu0 0.0
    %216 = vmatpush2.msra.mxu0 0.0
    %217 = vmatprep.subr.mxu0 0.0
    %218 = vmatpush2.msra.mxu0 0.0
    %219 = vmatprep.subr.mxu0 0.0
    %220 = vmatpush2.msra.mxu0 0.0
    %221 = vmatprep.subr.mxu0 0.0
    %222 = vmatpush2.msra.mxu0 0.0
    %223 = vmatprep.subr.mxu0 0.0
    %224 = vmatpush2.msra.mxu0 0.0
    %225 = vmatprep.subr.mxu0 0.0
    %226 = vmatpush2.msra.mxu0 0.0
    %227 = vmatprep.subr.mxu0 0.0
    %228 = vmatpush2.msra.mxu0 0.0
    %229 = vmatprep.subr.mxu0 0.0
    %230 = vmatpush2.msra.mxu0 0.0
    %231 = vmatprep.subr.mxu0 0.0
    %232 = vmatpush2.msra.mxu0 0.0
    %233 = vmatprep.subr.mxu0 0.0
    %234 = vmatpush2.msra.mxu0 0.0
    %235 = vmatprep.subr.mxu0 0.0
    %236 = vmatpush2.msra.mxu0 0.0
    %237 = vmatprep.subr.mxu0 0.0
    %238 = vmatpush2.msra.mxu0 0.0
    %239 = vmatprep.subr.mxu0 0.0
    %240 = vmatpush2.msra.mxu0 0.0
    %241 = vmatprep.subr.mxu0 0.0
    %242 = vmatpush2.msra.mxu0 0.0
    %243 = vmatprep.subr.mxu0 0.0
    %244 = vmatpush2.msra.mxu0 0.0
    %245 = vmatprep.mubr.f32.mxu0 0.0
    %v246 = vand.u32 %v21, 4294901760
    %v247 = vsub.f32 %v21, %v246
    %248 = vmatmul.mubr.f32.gmra.mxu0 %v247
    %v249 = vpop.f32.mrf.mxu0
    %v250 = vadd.f32 %v176, %v249
    %v251 = vpop.f32.mrf.mxu0
    %252 = vdwg.mxu0
    %253 = vmatprep.subr.mxu0 0.0
    %254 = vmatpush1.msra.mxu0 0.0
    %255 = vmatprep.subr.mxu0 0.0
    %256 = vmatpush1.msra.mxu0 0.0
    %257 = vmatprep.subr.mxu0 0.0
    %258 = vmatpush1.msra.mxu0 0.0
    %259 = vmatprep.subr.mxu0 0.0
    %260 = vmatpush1.msra.mxu0 0.0
    %261 = vmatprep.subr.mxu0 0.0
    %262 = vmatpush1.msra.mxu0 0.0
    %263 = vmatprep.subr.mxu0 0.0
    %264 = vmatpush1.msra.mxu0 0.0
    %265 = vmatprep.subr.mxu0 0.0
    %266 = vmatpush1.msra.mxu0 0.0
    %267 = vmatprep.subr.mxu0 0.0
    %268 = vmatpush1.msra.mxu0 0.0
    %269 = vmatprep.subr.mxu0 0.0
    %270 = vmatpush1.msra.mxu0 0.0
    %271 = vmatprep.subr.mxu0 0.0
    %272 = vmatpush1.msra.mxu0 0.0
    %273 = vmatprep.subr.mxu0 0.0
    %274 = vmatpush1.msra.mxu0 0.0
    %275 = vmatprep.subr.mxu0 0.0
    %276 = vmatpush1.msra.mxu0 0.0
    %277 = vmatprep.subr.mxu0 0.0
    %278 = vmatpush1.msra.mxu0 0.0
    %279 = vmatprep.subr.mxu0 0.0
    %280 = vmatpush1.msra.mxu0 0.0
    %281 = vmatprep.subr.mxu0 0.0
    %282 = vmatpush1.msra.mxu0 0.0
    %283 = vmatprep.subr.mxu0 0.0
    %v284 = vand.u32 %v25, 4294901760
    %285 = vmatpush1.msra.mxu0 %v284
    %286 = vmatprep.subr.mxu0 0.0
    %287 = vmatpush2.msra.mxu0 0.0
    %288 = vmatprep.subr.mxu0 0.0
    %289 = vmatpush2.msra.mxu0 0.0
    %290 = vmatprep.subr.mxu0 0.0
    %291 = vmatpush2.msra.mxu0 0.0
    %292 = vmatprep.subr.mxu0 0.0
    %293 = vmatpush2.msra.mxu0 0.0
    %294 = vmatprep.subr.mxu0 0.0
    %295 = vmatpush2.msra.mxu0 0.0
    %296 = vmatprep.subr.mxu0 0.0
    %297 = vmatpush2.msra.mxu0 0.0
    %298 = vmatprep.subr.mxu0 0.0
    %299 = vmatpush2.msra.mxu0 0.0
    %300 = vmatprep.subr.mxu0 0.0
    %301 = vmatpush2.msra.mxu0 0.0
    %302 = vmatprep.subr.mxu0 0.0
    %303 = vmatpush2.msra.mxu0 0.0
    %304 = vmatprep.subr.mxu0 0.0
    %305 = vmatpush2.msra.mxu0 0.0
    %306 = vmatprep.subr.mxu0 0.0
    %307 = vmatpush2.msra.mxu0 0.0
    %308 = vmatprep.subr.mxu0 0.0
    %309 = vmatpush2.msra.mxu0 0.0
    %310 = vmatprep.subr.mxu0 0.0
    %311 = vmatpush2.msra.mxu0 0.0
    %312 = vmatprep.subr.mxu0 0.0
    %313 = vmatpush2.msra.mxu0 0.0
    %314 = vmatprep.subr.mxu0 0.0
    %315 = vmatpush2.msra.mxu0 0.0
    %316 = vmatprep.subr.mxu0 0.0
    %317 = vmatpush2.msra.mxu0 0.0
    %318 = vmatprep.mubr.f32.mxu0 0.0
    %v319 = vand.u32 %v21, 4294901760
    %v320 = vsub.f32 %v21, %v319
    %v321 = vand.u32 %v320, 4294901760
    %322 = vmatmul.mubr.f32.gmra.mxu0 %v321
    %v323 = vpop.f32.mrf.mxu0
    %v324 = vadd.f32 %v250, %v323
    %v325 = vpop.f32.mrf.mxu0
    %326 = vdwg.mxu0
    %327 = vmatprep.subr.mxu0 0.0
    %328 = vmatpush1.msra.mxu0 0.0
    %329 = vmatprep.subr.mxu0 0.0
    %330 = vmatpush1.msra.mxu0 0.0
    %331 = vmatprep.subr.mxu0 0.0
    %332 = vmatpush1.msra.mxu0 0.0
    %333 = vmatprep.subr.mxu0 0.0
    %334 = vmatpush1.msra.mxu0 0.0
    %335 = vmatprep.subr.mxu0 0.0
    %336 = vmatpush1.msra.mxu0 0.0
    %337 = vmatprep.subr.mxu0 0.0
    %338 = vmatpush1.msra.mxu0 0.0
    %339 = vmatprep.subr.mxu0 0.0
    %340 = vmatpush1.msra.mxu0 0.0
    %341 = vmatprep.subr.mxu0 0.0
    %342 = vmatpush1.msra.mxu0 0.0
    %343 = vmatprep.subr.mxu0 0.0
    %344 = vmatpush1.msra.mxu0 0.0
    %345 = vmatprep.subr.mxu0 0.0
    %346 = vmatpush1.msra.mxu0 0.0
    %347 = vmatprep.subr.mxu0 0.0
    %348 = vmatpush1.msra.mxu0 0.0
    %349 = vmatprep.subr.mxu0 0.0
    %350 = vmatpush1.msra.mxu0 0.0
    %351 = vmatprep.subr.mxu0 0.0
    %352 = vmatpush1.msra.mxu0 0.0
    %353 = vmatprep.subr.mxu0 0.0
    %354 = vmatpush1.msra.mxu0 0.0
    %355 = vmatprep.subr.mxu0 0.0
    %356 = vmatpush1.msra.mxu0 0.0
    %357 = vmatprep.subr.mxu0 0.0
    %v358 = vand.u32 %v25, 4294901760
    %v359 = vsub.f32 %v25, %v358
    %v360 = vand.u32 %v359, 4294901760
    %361 = vmatpush1.msra.mxu0 %v360
    %362 = vmatprep.subr.mxu0 0.0
    %363 = vmatpush2.msra.mxu0 0.0
    %364 = vmatprep.subr.mxu0 0.0
    %365 = vmatpush2.msra.mxu0 0.0
    %366 = vmatprep.subr.mxu0 0.0
    %367 = vmatpush2.msra.mxu0 0.0
    %368 = vmatprep.subr.mxu0 0.0
    %369 = vmatpush2.msra.mxu0 0.0
    %370 = vmatprep.subr.mxu0 0.0
    %371 = vmatpush2.msra.mxu0 0.0
    %372 = vmatprep.subr.mxu0 0.0
    %373 = vmatpush2.msra.mxu0 0.0
    %374 = vmatprep.subr.mxu0 0.0
    %375 = vmatpush2.msra.mxu0 0.0
    %376 = vmatprep.subr.mxu0 0.0
    %377 = vmatpush2.msra.mxu0 0.0
    %378 = vmatprep.subr.mxu0 0.0
    %379 = vmatpush2.msra.mxu0 0.0
    %380 = vmatprep.subr.mxu0 0.0
    %381 = vmatpush2.msra.mxu0 0.0
    %382 = vmatprep.subr.mxu0 0.0
    %383 = vmatpush2.msra.mxu0 0.0
    %384 = vmatprep.subr.mxu0 0.0
    %385 = vmatpush2.msra.mxu0 0.0
    %386 = vmatprep.subr.mxu0 0.0
    %387 = vmatpush2.msra.mxu0 0.0
    %388 = vmatprep.subr.mxu0 0.0
    %389 = vmatpush2.msra.mxu0 0.0
    %390 = vmatprep.subr.mxu0 0.0
    %391 = vmatpush2.msra.mxu0 0.0
    %392 = vmatprep.subr.mxu0 0.0
    %393 = vmatpush2.msra.mxu0 0.0
    %394 = vmatprep.mubr.f32.mxu0 0.0
    %v395 = vand.u32 %v21, 4294901760
    %396 = vmatmul.mubr.f32.gmra.mxu0 %v395
    %v397 = vpop.f32.mrf.mxu0
    %v398 = vadd.f32 %v324, %v397
    %v399 = vpop.f32.mrf.mxu0
    %400 = vdwg.mxu0
    %401 = vmatprep.subr.mxu0 0.0
    %402 = vmatpush1.msra.mxu0 0.0
    %403 = vmatprep.subr.mxu0 0.0
    %404 = vmatpush1.msra.mxu0 0.0
    %405 = vmatprep.subr.mxu0 0.0
    %406 = vmatpush1.msra.mxu0 0.0
    %407 = vmatprep.subr.mxu0 0.0
    %408 = vmatpush1.msra.mxu0 0.0
    %409 = vmatprep.subr.mxu0 0.0
    %410 = vmatpush1.msra.mxu0 0.0
    %411 = vmatprep.subr.mxu0 0.0
    %412 = vmatpush1.msra.mxu0 0.0
    %413 = vmatprep.subr.mxu0 0.0
    %414 = vmatpush1.msra.mxu0 0.0
    %415 = vmatprep.subr.mxu0 0.0
    %416 = vmatpush1.msra.mxu0 0.0
    %417 = vmatprep.subr.mxu0 0.0
    %418 = vmatpush1.msra.mxu0 0.0
    %419 = vmatprep.subr.mxu0 0.0
    %420 = vmatpush1.msra.mxu0 0.0
    %421 = vmatprep.subr.mxu0 0.0
    %422 = vmatpush1.msra.mxu0 0.0
    %423 = vmatprep.subr.mxu0 0.0
    %424 = vmatpush1.msra.mxu0 0.0
    %425 = vmatprep.subr.mxu0 0.0
    %426 = vmatpush1.msra.mxu0 0.0
    %427 = vmatprep.subr.mxu0 0.0
    %428 = vmatpush1.msra.mxu0 0.0
    %429 = vmatprep.subr.mxu0 0.0
    %430 = vmatpush1.msra.mxu0 0.0
    %431 = vmatprep.subr.mxu0 0.0
    %v432 = vand.u32 %v25, 4294901760
    %433 = vmatpush1.msra.mxu0 %v432
    %434 = vmatprep.subr.mxu0 0.0
    %435 = vmatpush2.msra.mxu0 0.0
    %436 = vmatprep.subr.mxu0 0.0
    %437 = vmatpush2.msra.mxu0 0.0
    %438 = vmatprep.subr.mxu0 0.0
    %439 = vmatpush2.msra.mxu0 0.0
    %440 = vmatprep.subr.mxu0 0.0
    %441 = vmatpush2.msra.mxu0 0.0
    %442 = vmatprep.subr.mxu0 0.0
    %443 = vmatpush2.msra.mxu0 0.0
    %444 = vmatprep.subr.mxu0 0.0
    %445 = vmatpush2.msra.mxu0 0.0
    %446 = vmatprep.subr.mxu0 0.0
    %447 = vmatpush2.msra.mxu0 0.0
    %448 = vmatprep.subr.mxu0 0.0
    %449 = vmatpush2.msra.mxu0 0.0
    %450 = vmatprep.subr.mxu0 0.0
    %451 = vmatpush2.msra.mxu0 0.0
    %452 = vmatprep.subr.mxu0 0.0
    %453 = vmatpush2.msra.mxu0 0.0
    %454 = vmatprep.subr.mxu0 0.0
    %455 = vmatpush2.msra.mxu0 0.0
    %456 = vmatprep.subr.mxu0 0.0
    %457 = vmatpush2.msra.mxu0 0.0
    %458 = vmatprep.subr.mxu0 0.0
    %459 = vmatpush2.msra.mxu0 0.0
    %460 = vmatprep.subr.mxu0 0.0
    %461 = vmatpush2.msra.mxu0 0.0
    %462 = vmatprep.subr.mxu0 0.0
    %463 = vmatpush2.msra.mxu0 0.0
    %464 = vmatprep.subr.mxu0 0.0
    %465 = vmatpush2.msra.mxu0 0.0
    %466 = vmatprep.mubr.f32.mxu0 0.0
    %v467 = vand.u32 %v21, 4294901760
    %468 = vmatmul.mubr.f32.gmra.mxu0 %v467
    %v469 = vpop.f32.mrf.mxu0
    %v470 = vadd.f32 %v398, %v469
    %v471 = vpop.f32.mrf.mxu0
    %472 = vdwg.mxu0
    %v473 = vld [vmem:[%s1] sm:$0x1]
    %v475 = vlaneseq
    %v476 = vshrl.u32 %v475, 7
    %v477 = vsub.s32 0, %v476
    %v478 = vrot.slane %v473, %v477
    %v480 = vmul.f32 %v470, %v478
    %481 = vst [vmem:[#allocation2] sm:$0xff] %v480
    // Predicated region
    $region14: #{tpu_custom_call.1} parent=1 // pred_check
      _
    $region15: #{tpu_custom_call.1} parent=1 // pred_check_branch
      %483 = sbr.rel (0) target = $region17
    $region16: #{tpu_custom_call.1} parent=1 // pred_region
      %s485 = ssub.s32 128, 128
      %486 = vsyncadd [#allocation3], %s485
      %s488 = sshll.u32 [#allocation2], 4
      %s489 = int_to_ptr.vmem [resolvable:$true] %s488
      %491 = dma.vmem_to_hbm [thread:$0]  %s489, 128, %s3, [#allocation3]
    $region17: #{tpu_custom_call.1} parent=1 // pred_fallthru
      _
    // Predicated region
    $region18: #{tpu_custom_call.1} parent=1 // pred_check
      _
    $region19: #{tpu_custom_call.1} parent=1 // pred_check_branch
      %493 = sbr.rel (0) target = $region21
    $region20: #{tpu_custom_call.1} parent=1 // pred_region
      %494 = dma.done [#allocation3], 128
    $region21: #{tpu_custom_call.1} parent=1 // pred_fallthru
      _
    %495 = vsyncpa [#allocation3], 1

// kernel: tpu_custom_call.1
$region0: #{tpu_custom_call.1}
  #allocation0 [shape = 'u32[]', space=smem, size = 0x4, offset = 0x4, fixed_abs, tag = 'smem constant byte address 0x4 - core index']
  #allocation1 [shape = 'u32[144,128]{1,0:T(1,128)}', space=vmem, size = 0x12000, scoped, tag = 'internal scratch']
  %s0 = inlined_call_operand.vmem [shape: f32[8,4], index: 0, kind: input, shape index: {}]
  %s1 = inlined_call_operand.vmem [shape: f32[1,128], index: 1, kind: input, shape index: {}]
  %s2 = inlined_call_operand.vmem [shape: f32[4,128], index: 2, kind: input, shape index: {}]
  %s3 = inlined_call_operand.hbm [shape: f32[8,128], index: 3, kind: output, shape index: {}]
  %s4 = sld [smem:[#allocation0]]
  $region22: #{tpu_custom_call.1} parent=0
    _
  %s6 = ssub.s32 1, %s4
  %s7 = scalar_select 0, %s6, %s4
  $region1: #{tpu_custom_call.1} parent=0
    #allocation2 [shape = 'u8[4096]{0}', space=vmem, size = 0x1000, scoped, tag = 'output window, operand 0, single buffered']
    #allocation3 [shape = 's32[1]{0}', space=sflag, size = 0x4, scoped, tag = 'scoped memory for tpu_custom_call.1']
    %8 = vsyncpa [#allocation3], 0
    // Predicated region
    $region2: #{tpu_custom_call.1} parent=1 // pred_check
      _
    $region3: #{tpu_custom_call.1} parent=1 // pred_check_branch
      %10 = sbr.rel (0) target = $region5
    $region4: #{tpu_custom_call.1} parent=1 // pred_region
      _
    $region5: #{tpu_custom_call.1} parent=1 // pred_fallthru
      _
    // Predicated region
    $region6: #{tpu_custom_call.1} parent=1 // pred_check
      _
    $region7: #{tpu_custom_call.1} parent=1 // pred_check_branch
      %12 = sbr.rel (0) target = $region9
    $region8: #{tpu_custom_call.1} parent=1 // pred_region
      _
    $region9: #{tpu_custom_call.1} parent=1 // pred_fallthru
      _
    // Predicated region
    $region10: #{tpu_custom_call.1} parent=1 // pred_check
      _
    $region11: #{tpu_custom_call.1} parent=1 // pred_check_branch
      %14 = sbr.rel (0) target = $region13
    $region12: #{tpu_custom_call.1} parent=1 // pred_region
      _
    $region13: #{tpu_custom_call.1} parent=1 // pred_fallthru
      _
    %s15 = smul.u32 0, 8
    %s16 = scalar_lea.vmem %s0, %s15
    %v17 = vld [vmem:[%s16] sm:$0xff]
    %19 = vset.pattern.permute.xlu0 0
    %20 = vperm.xlu0 %19, %v17
    %v21 = vpop.permute.xlu0 %20
    %23 = vset.pattern.permute.xlu0 1
    %24 = vperm.xlu0 %23, %v17
    %v25 = vpop.permute.xlu0 %24
    %27 = vset.pattern.permute.xlu0 2
    %28 = vperm.xlu0 %27, %v17
    %v29 = vpop.permute.xlu0 %28
    %31 = vset.pattern.permute.xlu0 3
    %32 = vperm.xlu0 %31, %v17
    %v33 = vpop.permute.xlu0 %32
    %vm35 = vcmask 261120
    %v36 = vsel %vm35, %v21, %v25
    %vm37 = vcmask 523264
    %v38 = vsel %vm37, %v36, %v29
    %vm39 = vcmask 785408
    %v40 = vsel %vm39, %v38, %v33
    %v41 = vld [vmem:[%s1] sm:$0x1]
    %v43 = vlaneseq
    %v44 = vshrl.u32 %v43, 7
    %v45 = vsub.s32 0, %v44
    %v46 = vrot.slane %v41, %v45
    %v48 = vmul.f32 %v40, %v46
    %49 = vst [vmem:[#allocation2] sm:$0xff] %v48
    // Predicated region
    $region14: #{tpu_custom_call.1} parent=1 // pred_check
      _
    $region15: #{tpu_custom_call.1} parent=1 // pred_check_branch
      %51 = sbr.rel (0) target = $region17
    $region16: #{tpu_custom_call.1} parent=1 // pred_region
      %s53 = ssub.s32 128, 128
      %54 = vsyncadd [#allocation3], %s53
      %s56 = sshll.u32 [#allocation2], 4
      %s57 = int_to_ptr.vmem [resolvable:$true] %s56
      %59 = dma.vmem_to_hbm [thread:$0]  %s57, 128, %s3, [#allocation3]
    $region17: #{tpu_custom_call.1} parent=1 // pred_fallthru
      _
    // Predicated region
    $region18: #{tpu_custom_call.1} parent=1 // pred_check
      _
    $region19: #{tpu_custom_call.1} parent=1 // pred_check_branch
      %61 = sbr.rel (0) target = $region21
    $region20: #{tpu_custom_call.1} parent=1 // pred_region
      %62 = dma.done [#allocation3], 128
    $region21: #{tpu_custom_call.1} parent=1 // pred_fallthru
      _
    %63 = vsyncpa [#allocation3], 1

</llo_original>
